<compile_context>
chip_gen: v5e
topology: v5e:2x2
jax: 0.10.0
libtpu: 0.0.40
codegen_flags: <defaults>
</compile_context>

<pallas_src>
import math

import jax
import jax.numpy as jnp
from jax.experimental import pallas as pl
from jax.experimental.pallas import tpu as pltpu


# ----------------------------- config --------------------------------------
class Config:
    input_dim = 16
    intermediate_size = 32
    latent_size = 8
    num_hidden_layers = 2  # -> 2 Linear+ReLU layers in the backbone


# ----------------------------- kernel --------------------------------------
def _make_encoder_kernel(num_backbone_layers: int):
    """Backbone Linear+ReLU layers followed by the fused (mu|logvar) head.

    Ref order: x, (w0,b0), ..., (w_{L-1},b_{L-1}), w_heads, b_heads, out.
    Weights are in the MXU/streaming dtype; biases are f32.
    """
    n_bb = num_backbone_layers

    def kernel(*refs):
        x_ref = refs[0]
        bb_refs = refs[1:1 + 2 * n_bb]
        w_h_ref = refs[1 + 2 * n_bb]
        b_h_ref = refs[2 + 2 * n_bb]
        out_ref = refs[3 + 2 * n_bb]

        # Feed the MXU in the streamed dtype (no f32 upcast before the dot);
        # accumulate in f32, do bias add + ReLU in f32.
        h = x_ref[...]
        for l in range(n_bb):
            w = bb_refs[2 * l][...]
            b = bb_refs[2 * l + 1][...]          # f32 [1, out]
            acc = jnp.dot(h.astype(w.dtype), w,
                          preferred_element_type=jnp.float32)
            h = jnp.maximum(acc + b, 0.0)

        w_h = w_h_ref[...]
        out = jnp.dot(h.astype(w_h.dtype), w_h,
                      preferred_element_type=jnp.float32) + b_h_ref[...]
        out_ref[...] = out.astype(out_ref.dtype)

    return kernel


# ----------------------------- helpers --------------------------------------
def _sublane_quantum(dtype):
    return {4: 8, 2: 16, 1: 32}.get(jnp.dtype(dtype).itemsize, 8)


def _full_spec(arr):
    # Constant-index full-array block: resident in VMEM across the row grid.
    return pl.BlockSpec(arr.shape, lambda i: (0, 0))


# ----------------------------- wrapper --------------------------------------
def gpvae_encoder_forward(x, params, *, tile_rows=2048, stream_dtype=None,
                          out_dtype=None):
    """x: [..., input_dim].  Returns (mu, logvar) with shape [..., latent].

    tile_rows:    folded rows processed per grid step.
    stream_dtype: optional dtype for the HBM->VMEM stream of x and the MXU
                  operands (e.g. jnp.bfloat16).  Accumulation/bias/ReLU stay
                  f32.  Default: x.dtype (exact f32 semantics).
    """
    lead = x.shape[:-1]
    d_in = x.shape[-1]
    latent = params["w_mu"].shape[1]
    m = math.prod(lead) if lead else 1

    if stream_dtype is None:
        stream_dtype = x.dtype
    stream_dtype = jnp.dtype(stream_dtype)
    if out_dtype is None:
        out_dtype = jnp.result_type(x.dtype, params["w_mu"].dtype)
    out_dtype = jnp.dtype(out_dtype)

    # Lane-fold factor: pack `fold` independent rows into the 128-wide lanes.
    fold = 128 // d_in if (0 < d_in < 128 and 128 % d_in == 0) else 1

    x2d = x.reshape(m, d_in)
    if x2d.dtype != stream_dtype:
        x2d = x2d.astype(stream_dtype)   # opt-in extra HBM pass

    m_fold = pl.cdiv(m, fold) * fold
    if m_fold != m:
        # Minimal pad so rows fold cleanly; padded rows are independent and
        # sliced off below.  No padding to tile boundaries (Pallas masks the
        # partial last grid block).
        x2d = jnp.pad(x2d, ((0, m_fold - m), (0, 0)))
    mf = m_fold // fold
    lanes_in = fold * d_in
    xf = x2d.reshape(mf, lanes_in)

    # --- block-diagonally replicated weights (tiny, ~0.5 MiB total) --------
    eye_f = jnp.eye(fold, dtype=jnp.float32)

    def fold_w(w):
        return jnp.kron(eye_f, w.astype(jnp.float32)).astype(stream_dtype)

    def fold_b(b):
        return jnp.tile(b.astype(jnp.float32), (1, fold))

    flat_params, in_specs = [], []
    for w, b in zip(params["backbone_w"], params["backbone_b"]):
        flat_params += [fold_w(w), fold_b(b)]
    w_heads = jnp.concatenate([params["w_mu"], params["w_lv"]], axis=1)
    b_heads = jnp.concatenate([params["b_mu"], params["b_lv"]], axis=1)
    flat_params += [fold_w(w_heads), fold_b(b_heads)]
    lanes_out = fold * 2 * latent
    n_bb = len(params["backbone_w"])

    # --- row tiling ----------------------------------------------------------
    sub = max(_sublane_quantum(stream_dtype), _sublane_quantum(out_dtype))
    tile_mf = max(sub, (int(tile_rows) // sub) * sub)
    # Cap at ~half the folded row count (rounded to the sublane quantum) so the
    # ("parallel",) axis yields >= 2 balanced tiles for v7x's two TensorCores.
    half = pl.cdiv(pl.cdiv(mf, 2), sub) * sub
    tile_mf = min(tile_mf, half)
    num_tiles = pl.cdiv(mf, tile_mf)

    in_specs = [pl.BlockSpec((tile_mf, lanes_in), lambda i: (i, 0))]
    in_specs += [_full_spec(a) for a in flat_params]
    out_specs = pl.BlockSpec((tile_mf, lanes_out), lambda i: (i, 0))
    out_shape = jax.ShapeDtypeStruct((mf, lanes_out), out_dtype)

    fused = pl.pallas_call(
        _make_encoder_kernel(n_bb),
        out_shape=out_shape,
        grid_spec=pltpu.PrefetchScalarGridSpec(
            num_scalar_prefetch=0,
            grid=(num_tiles,),
            in_specs=in_specs,
            out_specs=out_specs,
        ),
        compiler_params=pltpu.CompilerParams(
            dimension_semantics=("parallel",),
        ),
    )(xf, *flat_params)

    # Unfold lanes back into rows, drop padded rows, split mu / logvar.
    fused = fused.reshape(m_fold, 2 * latent)[:m]
    mu = fused[:, :latent].reshape(*lead, latent)
    logvar = fused[:, latent:].reshape(*lead, latent)
    return mu, logvar


# -------------------------- parameter init ----------------------------------
def init_params(config, key, dtype=jnp.float32):
    """PyTorch-Linear-like uniform init; weights stored [in, out], bias [1, out]."""

    def linear_init(key, fan_in, fan_out):
        kw, kb = jax.random.split(key)
        bound = 1.0 / math.sqrt(fan_in)
        w = jax.random.uniform(kw, (fan_in, fan_out), dtype, -bound, bound)
        b = jax.random.uniform(kb, (1, fan_out), dtype, -bound, bound)
        return w, b

    keys = jax.random.split(key, config.num_hidden_layers + 2)
    bb_w, bb_b = [], []
    in_dim = config.input_dim
    for l in range(config.num_hidden_layers):
        w, b = linear_init(keys[l], in_dim, config.intermediate_size)
        bb_w.append(w)
        bb_b.append(b)
        in_dim = config.intermediate_size
    w_mu, b_mu = linear_init(keys[-2], config.intermediate_size, config.latent_size)
    w_lv, b_lv = linear_init(keys[-1], config.intermediate_size, config.latent_size)
    return {"backbone_w": bb_w, "backbone_b": bb_b,
            "w_mu": w_mu, "b_mu": b_mu, "w_lv": w_lv, "b_lv": b_lv}


# -------------------------- reference (pure JAX) -----------------------------
def reference_forward(x, params, mxu_dtype=None):
    """Pure-JAX reference.  mxu_dtype quantizes dot operands (to mimic the
    bf16 streaming path); accumulation/bias/ReLU stay f32."""

    def q(a):
        a = a.astype(jnp.float32)
        if mxu_dtype is None:
            return a
        return a.astype(mxu_dtype).astype(jnp.float32)

    lead = x.shape[:-1]
    h = x.reshape(-1, x.shape[-1])
    for w, b in zip(params["backbone_w"], params["backbone_b"]):
        h = jnp.maximum(
            jnp.dot(q(h), q(w), preferred_element_type=jnp.float32)
            + b.astype(jnp.float32), 0.0)
    mu = jnp.dot(q(h), q(params["w_mu"]),
                 preferred_element_type=jnp.float32) + params["b_mu"]
    lv = jnp.dot(q(h), q(params["w_lv"]),
                 preferred_element_type=jnp.float32) + params["b_lv"]
    return mu.reshape(*lead, -1), lv.reshape(*lead, -1)


# ------------------------------ main -----------------------------------------
if __name__ == "__main__":
    cfg = Config()
    key = jax.random.PRNGKey(0)
    k_x1, k_x2, k_p = jax.random.split(key, 3)

    params = init_params(cfg, k_p)

    # --- test 1: small shape, f32 path (matches the original module) --------
    x1 = jax.random.normal(k_x1, (2, 8, cfg.input_dim), dtype=jnp.float32)
    mu1, lv1 = jax.block_until_ready(gpvae_encoder_forward(x1, params))
    mu1_r, lv1_r = reference_forward(x1, params)
    assert mu1.shape == (2, 8, cfg.latent_size)
    assert lv1.shape == (2, 8, cfg.latent_size)
    assert jnp.allclose(mu1, mu1_r, atol=2e-2, rtol=2e-2)
    assert jnp.allclose(lv1, lv1_r, atol=2e-2, rtol=2e-2)

    # --- test 2: row count not a multiple of 8 -> exercises the minimal fold
    # pad plus the masked partial last grid block (multi-tile grid).
    x2 = jax.random.normal(k_x2, (3, 50, cfg.input_dim), dtype=jnp.float32)
    mu2, lv2 = jax.block_until_ready(gpvae_encoder_forward(x2, params))
    mu2_r, lv2_r = reference_forward(x2, params)
    assert mu2.shape == (3, 50, cfg.latent_size)
    assert jnp.allclose(mu2, mu2_r, atol=2e-2, rtol=2e-2)
    assert jnp.allclose(lv2, lv2_r, atol=2e-2, rtol=2e-2)

    # --- test 3: bf16 streaming / native-MXU path (f32 accumulate) ----------
    mu3, lv3 = jax.block_until_ready(
        gpvae_encoder_forward(x1, params, stream_dtype=jnp.bfloat16))
    mu3_r, lv3_r = reference_forward(x1, params, mxu_dtype=jnp.bfloat16)
    assert jnp.allclose(mu3, mu3_r, atol=5e-2, rtol=5e-2)
    assert jnp.allclose(lv3, lv3_r, atol=5e-2, rtol=5e-2)

    print("KERNEL_OK")
</pallas_src>

<mosaic_0001>
module attributes {stable_mosaic.version = 11 : i64} {
  func.func @kernel(%arg0: i32, %arg1: memref<8x128xf32, #tpu.memory_space<vmem>>, %arg2: memref<128x256xf32, #tpu.memory_space<vmem>>, %arg3: memref<1x256xf32, #tpu.memory_space<vmem>>, %arg4: memref<256x256xf32, #tpu.memory_space<vmem>>, %arg5: memref<1x256xf32, #tpu.memory_space<vmem>>, %arg6: memref<256x128xf32, #tpu.memory_space<vmem>>, %arg7: memref<1x128xf32, #tpu.memory_space<vmem>>, %arg8: memref<8x128xf32, #tpu.memory_space<vmem>>) attributes {dimension_semantics = [#tpu.dimension_semantics<parallel>], iteration_bounds = array<i64: 1>, scalar_prefetch = 0 : i64, scratch_operands = 0 : i64, tpu.core_type = #tpu.core_type<tc>, window_params = [{transform_indices = @transform_0, window_bounds = array<i64: 8, 128>}, {pipeline_mode = #tpu.pipeline_mode<synchronous>, transform_indices = @transform_1, window_bounds = array<i64: 128, 256>}, {pipeline_mode = #tpu.pipeline_mode<synchronous>, transform_indices = @transform_2, window_bounds = array<i64: 1, 256>}, {pipeline_mode = #tpu.pipeline_mode<synchronous>, transform_indices = @transform_3, window_bounds = array<i64: 256, 256>}, {pipeline_mode = #tpu.pipeline_mode<synchronous>, transform_indices = @transform_4, window_bounds = array<i64: 1, 256>}, {pipeline_mode = #tpu.pipeline_mode<synchronous>, transform_indices = @transform_5, window_bounds = array<i64: 256, 128>}, {pipeline_mode = #tpu.pipeline_mode<synchronous>, transform_indices = @transform_6, window_bounds = array<i64: 1, 128>}, {transform_indices = @transform_7, window_bounds = array<i64: 8, 128>}]} {
    %c0 = arith.constant 0 : index
    %c0_0 = arith.constant 0 : index
    %0 = vector.load %arg1[%c0, %c0_0] : memref<8x128xf32, #tpu.memory_space<vmem>>, vector<8x128xf32>
    %c0_1 = arith.constant 0 : index
    %c0_2 = arith.constant 0 : index
    %1 = vector.load %arg2[%c0_1, %c0_2] : memref<128x256xf32, #tpu.memory_space<vmem>>, vector<128x256xf32>
    %c0_3 = arith.constant 0 : index
    %c0_4 = arith.constant 0 : index
    %2 = vector.load %arg3[%c0_3, %c0_4] : memref<1x256xf32, #tpu.memory_space<vmem>>, vector<1x256xf32>
    %cst = arith.constant dense<0.000000e+00> : vector<8x256xf32>
    %3 = tpu.matmul %0, %1, %cst {dimension_numbers = #tpu.dot_dimension_numbers<[1], [0], [0], [1], [0, 0, 1, 1], [], []>} : vector<8x128xf32>, vector<128x256xf32>, vector<8x256xf32> -> vector<8x256xf32>
    %4 = vector.broadcast %2 : vector<1x256xf32> to vector<8x256xf32>
    %5 = arith.addf %3, %4 : vector<8x256xf32>
    %cst_5 = arith.constant 0.000000e+00 : f32
    %6 = vector.broadcast %cst_5 : f32 to vector<8x256xf32>
    %7 = arith.maximumf %5, %6 : vector<8x256xf32>
    %c0_6 = arith.constant 0 : index
    %c0_7 = arith.constant 0 : index
    %8 = vector.load %arg4[%c0_6, %c0_7] : memref<256x256xf32, #tpu.memory_space<vmem>>, vector<256x256xf32>
    %c0_8 = arith.constant 0 : index
    %c0_9 = arith.constant 0 : index
    %9 = vector.load %arg5[%c0_8, %c0_9] : memref<1x256xf32, #tpu.memory_space<vmem>>, vector<1x256xf32>
    %cst_10 = arith.constant dense<0.000000e+00> : vector<8x256xf32>
    %10 = tpu.matmul %7, %8, %cst_10 {dimension_numbers = #tpu.dot_dimension_numbers<[1], [0], [0], [1], [0, 0, 1, 1], [], []>} : vector<8x256xf32>, vector<256x256xf32>, vector<8x256xf32> -> vector<8x256xf32>
    %11 = vector.broadcast %9 : vector<1x256xf32> to vector<8x256xf32>
    %12 = arith.addf %10, %11 : vector<8x256xf32>
    %cst_11 = arith.constant 0.000000e+00 : f32
    %13 = vector.broadcast %cst_11 : f32 to vector<8x256xf32>
    %14 = arith.maximumf %12, %13 : vector<8x256xf32>
    %c0_12 = arith.constant 0 : index
    %c0_13 = arith.constant 0 : index
    %15 = vector.load %arg6[%c0_12, %c0_13] : memref<256x128xf32, #tpu.memory_space<vmem>>, vector<256x128xf32>
    %cst_14 = arith.constant dense<0.000000e+00> : vector<8x128xf32>
    %16 = tpu.matmul %14, %15, %cst_14 {dimension_numbers = #tpu.dot_dimension_numbers<[1], [0], [0], [1], [0, 0, 1, 1], [], []>} : vector<8x256xf32>, vector<256x128xf32>, vector<8x128xf32> -> vector<8x128xf32>
    %c0_15 = arith.constant 0 : index
    %c0_16 = arith.constant 0 : index
    %17 = vector.load %arg7[%c0_15, %c0_16] : memref<1x128xf32, #tpu.memory_space<vmem>>, vector<1x128xf32>
    %18 = vector.broadcast %17 : vector<1x128xf32> to vector<8x128xf32>
    %19 = arith.addf %16, %18 : vector<8x128xf32>
    %c0_17 = arith.constant 0 : index
    %c0_18 = arith.constant 0 : index
    %20 = vector.load %arg8[%c0_17, %c0_18] : memref<8x128xf32, #tpu.memory_space<vmem>>, vector<8x128xf32>
    tpu.vector_store %arg8[%c0_17, %c0_18], %19 {strides = array<i32>} : memref<8x128xf32, #tpu.memory_space<vmem>>, vector<8x128xf32>,
    return
  }
  func.func @transform_0(%arg0: i32) -> (i32, i32) {
    %c0_i32 = arith.constant 0 : i32
    %c0_i32_0 = arith.constant 0 : i32
    return %arg0, %c0_i32 : i32, i32
  }
  func.func @transform_1(%arg0: i32) -> (i32, i32) {
    %c0_i32 = arith.constant 0 : i32
    %c0_i32_0 = arith.constant 0 : i32
    %c0_i32_1 = arith.constant 0 : i32
    return %c0_i32, %c0_i32_0 : i32, i32
  }
  func.func @transform_2(%arg0: i32) -> (i32, i32) {
    %c0_i32 = arith.constant 0 : i32
    %c0_i32_0 = arith.constant 0 : i32
    %c0_i32_1 = arith.constant 0 : i32
    return %c0_i32, %c0_i32_0 : i32, i32
  }
  func.func @transform_3(%arg0: i32) -> (i32, i32) {
    %c0_i32 = arith.constant 0 : i32
    %c0_i32_0 = arith.constant 0 : i32
    %c0_i32_1 = arith.constant 0 : i32
    return %c0_i32, %c0_i32_0 : i32, i32
  }
  func.func @transform_4(%arg0: i32) -> (i32, i32) {
    %c0_i32 = arith.constant 0 : i32
    %c0_i32_0 = arith.constant 0 : i32
    %c0_i32_1 = arith.constant 0 : i32
    return %c0_i32, %c0_i32_0 : i32, i32
  }
  func.func @transform_5(%arg0: i32) -> (i32, i32) {
    %c0_i32 = arith.constant 0 : i32
    %c0_i32_0 = arith.constant 0 : i32
    %c0_i32_1 = arith.constant 0 : i32
    return %c0_i32, %c0_i32_0 : i32, i32
  }
  func.func @transform_6(%arg0: i32) -> (i32, i32) {
    %c0_i32 = arith.constant 0 : i32
    %c0_i32_0 = arith.constant 0 : i32
    %c0_i32_1 = arith.constant 0 : i32
    return %c0_i32, %c0_i32_0 : i32, i32
  }
  func.func @transform_7(%arg0: i32) -> (i32, i32) {
    %c0_i32 = arith.constant 0 : i32
    %c0_i32_0 = arith.constant 0 : i32
    return %arg0, %c0_i32 : i32, i32
  }
}

</mosaic_0001>

<llo_original>
// kernel: tpu_custom_call.1
$region0: #{tpu_custom_call.1}
  #allocation0 [shape = 'u32[]', space=smem, size = 0x4, offset = 0x4, fixed_abs, tag = 'smem constant byte address 0x4 - core index']
  #allocation1 [shape = 'u32[72,128]{1,0:T(1,128)}', space=vmem, size = 0x9000, scoped, tag = 'internal scratch']
  %s0 = inlined_call_operand.hbm [shape: f32[2,128], index: 0, kind: input, shape index: {}]
  %s1 = inlined_call_operand.hbm [shape: f32[128,256], index: 1, kind: input, shape index: {}]
  %s2 = inlined_call_operand.hbm [shape: f32[1,256], index: 2, kind: input, shape index: {}]
  %s3 = inlined_call_operand.hbm [shape: f32[256,256], index: 3, kind: input, shape index: {}]
  %s4 = inlined_call_operand.vmem [shape: f32[1,256], index: 4, kind: input, shape index: {}]
  %s5 = inlined_call_operand.hbm [shape: f32[256,128], index: 5, kind: input, shape index: {}]
  %s6 = inlined_call_operand.vmem [shape: f32[1,128], index: 6, kind: input, shape index: {}]
  %s7 = inlined_call_operand.hbm [shape: f32[2,128], index: 7, kind: output, shape index: {}]
  %s8 = sld [smem:[#allocation0]]
  $region58: #{tpu_custom_call.1} parent=0
    _
  %s10 = ssub.s32 1, %s8
  %s11 = scalar_select 0, %s10, %s8
  $region1: #{tpu_custom_call.1} parent=0
    #allocation2 [shape = 'u8[4096]{0}', space=vmem, size = 0x1000, scoped, tag = 'input window, operand 0, single buffered']
    #allocation3 [shape = 's32[1]{0}', space=sflag, size = 0x4, scoped, tag = 'scoped memory for tpu_custom_call.1']
    #allocation4 [shape = 's32[1]{0}', space=sflag, size = 0x4, scoped, tag = 'scoped memory for tpu_custom_call.1']
    #allocation5 [shape = 'u8[131072]{0}', space=vmem, size = 0x20000, scoped, tag = 'input window, operand 1, single buffered']
    #allocation6 [shape = 's32[1]{0}', space=sflag, size = 0x4, scoped, tag = 'scoped memory for tpu_custom_call.1']
    #allocation7 [shape = 'u8[1024]{0}', space=vmem, size = 0x400, scoped, tag = 'input window, operand 2, single buffered']
    #allocation8 [shape = 'u8[262144]{0}', space=vmem, size = 0x40000, scoped, tag = 'input window, operand 3, single buffered']
    #allocation9 [shape = 's32[1]{0}', space=sflag, size = 0x4, scoped, tag = 'scoped memory for tpu_custom_call.1']
    #allocation10 [shape = 'u8[131072]{0}', space=vmem, size = 0x20000, scoped, tag = 'input window, operand 5, single buffered']
    #allocation11 [shape = 'u8[4096]{0}', space=vmem, size = 0x1000, scoped, tag = 'output window, operand 0, single buffered']
    %12 = vsyncpa [#allocation3], 0
    %13 = vsyncpa [#allocation6], 0
    %14 = vsyncpa [#allocation9], 0
    %15 = vsyncpa [#allocation4], 0
    // Predicated region
    $region2: #{tpu_custom_call.1} parent=1 // pred_check
      _
    $region3: #{tpu_custom_call.1} parent=1 // pred_check_branch
      %17 = sbr.rel (0) target = $region5
    $region4: #{tpu_custom_call.1} parent=1 // pred_region
      %19 = vsyncadd [#allocation3], 96
      %s20 = sshll.u32 %s0, 4
      %s21 = int_to_ptr.hbm [resolvable:$true] %s20
      %s22 = sshll.u32 [#allocation2], 4
      %s23 = int_to_ptr.vmem [resolvable:$true] %s22
      %28 = dma.hbm_to_vmem [thread:$0]  %s21, 32, %s23, [#allocation3], 32, 32, 2
    $region5: #{tpu_custom_call.1} parent=1 // pred_fallthru
      _
    // Predicated region
    $region6: #{tpu_custom_call.1} parent=1 // pred_check
      _
    $region7: #{tpu_custom_call.1} parent=1 // pred_check_branch
      %30 = sbr.rel (0) target = $region9
    $region8: #{tpu_custom_call.1} parent=1 // pred_region
      %32 = vsyncadd [#allocation6], 0
      %s33 = sshll.u32 %s1, 4
      %s34 = int_to_ptr.hbm [resolvable:$true] %s33
      %s35 = sshll.u32 [#allocation5], 4
      %s36 = int_to_ptr.vmem [resolvable:$true] %s35
      %41 = dma.hbm_to_vmem [thread:$0]  %s34, 4096, %s36, [#allocation6], 256, 256, 16
    $region9: #{tpu_custom_call.1} parent=1 // pred_fallthru
      _
    // Predicated region
    $region10: #{tpu_custom_call.1} parent=1 // pred_check
      _
    $region11: #{tpu_custom_call.1} parent=1 // pred_check_branch
      %43 = sbr.rel (0) target = $region13
    $region12: #{tpu_custom_call.1} parent=1 // pred_region
      %45 = vsyncadd [#allocation6], 0
      %s47 = sshll.u32 %s2, 4
      %s48 = int_to_ptr.hbm [resolvable:$true] %s47
      %s49 = sshll.u32 [#allocation7], 4
      %s50 = int_to_ptr.vmem [resolvable:$true] %s49
      %52 = dma.hbm_to_vmem [thread:$0]  %s48, 32, %s50, [#allocation6]
    $region13: #{tpu_custom_call.1} parent=1 // pred_fallthru
      _
    // Predicated region
    $region14: #{tpu_custom_call.1} parent=1 // pred_check
      _
    $region15: #{tpu_custom_call.1} parent=1 // pred_check_branch
      %54 = sbr.rel (0) target = $region17
    $region16: #{tpu_custom_call.1} parent=1 // pred_region
      %56 = vsyncadd [#allocation9], 0
      %s57 = sshll.u32 %s3, 4
      %s58 = int_to_ptr.hbm [resolvable:$true] %s57
      %s59 = sshll.u32 [#allocation8], 4
      %s60 = int_to_ptr.vmem [resolvable:$true] %s59
      %65 = dma.hbm_to_vmem [thread:$0]  %s58, 8192, %s60, [#allocation9], 256, 256, 16
    $region17: #{tpu_custom_call.1} parent=1 // pred_fallthru
      _
    // Predicated region
    $region18: #{tpu_custom_call.1} parent=1 // pred_check
      _
    $region19: #{tpu_custom_call.1} parent=1 // pred_check_branch
      %67 = sbr.rel (0) target = $region21
    $region20: #{tpu_custom_call.1} parent=1 // pred_region
      _
    $region21: #{tpu_custom_call.1} parent=1 // pred_fallthru
      _
    // Predicated region
    $region22: #{tpu_custom_call.1} parent=1 // pred_check
      _
    $region23: #{tpu_custom_call.1} parent=1 // pred_check_branch
      %69 = sbr.rel (0) target = $region25
    $region24: #{tpu_custom_call.1} parent=1 // pred_region
      %71 = vsyncadd [#allocation9], 0
      %s72 = sshll.u32 %s5, 4
      %s73 = int_to_ptr.hbm [resolvable:$true] %s72
      %s74 = sshll.u32 [#allocation10], 4
      %s75 = int_to_ptr.vmem [resolvable:$true] %s74
      %80 = dma.hbm_to_vmem [thread:$0]  %s73, 4096, %s75, [#allocation9], 128, 128, 8
    $region25: #{tpu_custom_call.1} parent=1 // pred_fallthru
      _
    // Predicated region
    $region26: #{tpu_custom_call.1} parent=1 // pred_check
      _
    $region27: #{tpu_custom_call.1} parent=1 // pred_check_branch
      %82 = sbr.rel (0) target = $region29
    $region28: #{tpu_custom_call.1} parent=1 // pred_region
      _
    $region29: #{tpu_custom_call.1} parent=1 // pred_fallthru
      _
    // Predicated region
    $region30: #{tpu_custom_call.1} parent=1 // pred_check
      _
    $region31: #{tpu_custom_call.1} parent=1 // pred_check_branch
      %84 = sbr.rel (0) target = $region33
    $region32: #{tpu_custom_call.1} parent=1 // pred_region
      %86 = dma.done [#allocation3], 128
    $region33: #{tpu_custom_call.1} parent=1 // pred_fallthru
      _
    // Predicated region
    $region34: #{tpu_custom_call.1} parent=1 // pred_check
      _
    $region35: #{tpu_custom_call.1} parent=1 // pred_check_branch
      %88 = sbr.rel (0) target = $region37
    $region36: #{tpu_custom_call.1} parent=1 // pred_region
      %90 = dma.done [#allocation6], 4096
    $region37: #{tpu_custom_call.1} parent=1 // pred_fallthru
      _
    // Predicated region
    $region38: #{tpu_custom_call.1} parent=1 // pred_check
      _
    $region39: #{tpu_custom_call.1} parent=1 // pred_check_branch
      %92 = sbr.rel (0) target = $region41
    $region40: #{tpu_custom_call.1} parent=1 // pred_region
      %94 = dma.done [#allocation6], 32
    $region41: #{tpu_custom_call.1} parent=1 // pred_fallthru
      _
    // Predicated region
    $region42: #{tpu_custom_call.1} parent=1 // pred_check
      _
    $region43: #{tpu_custom_call.1} parent=1 // pred_check_branch
      %96 = sbr.rel (0) target = $region45
    $region44: #{tpu_custom_call.1} parent=1 // pred_region
      %98 = dma.done [#allocation9], 8192
    $region45: #{tpu_custom_call.1} parent=1 // pred_fallthru
      _
    // Predicated region
    $region46: #{tpu_custom_call.1} parent=1 // pred_check
      _
    $region47: #{tpu_custom_call.1} parent=1 // pred_check_branch
      %100 = sbr.rel (0) target = $region49
    $region48: #{tpu_custom_call.1} parent=1 // pred_region
      %102 = dma.done [#allocation9], 4096
    $region49: #{tpu_custom_call.1} parent=1 // pred_fallthru
      _
    %v103 = vld [vmem:[#allocation2] sm:$0xff]
    %v104 = vld [vmem:[#allocation5] sm:$0xff]
    %v105 = vld [vmem:[#allocation5 + $0x8] sm:$0xff]
    %v106 = vld [vmem:[#allocation5 + $0x10] sm:$0xff]
    %v107 = vld [vmem:[#allocation5 + $0x18] sm:$0xff]
    %v108 = vld [vmem:[#allocation5 + $0x20] sm:$0xff]
    %v109 = vld [vmem:[#allocation5 + $0x28] sm:$0xff]
    %v110 = vld [vmem:[#allocation5 + $0x30] sm:$0xff]
    %v111 = vld [vmem:[#allocation5 + $0x38] sm:$0xff]
    %v112 = vld [vmem:[#allocation5 + $0x40] sm:$0xff]
    %v113 = vld [vmem:[#allocation5 + $0x48] sm:$0xff]
    %v114 = vld [vmem:[#allocation5 + $0x50] sm:$0xff]
    %v115 = vld [vmem:[#allocation5 + $0x58] sm:$0xff]
    %v116 = vld [vmem:[#allocation5 + $0x60] sm:$0xff]
    %v117 = vld [vmem:[#allocation5 + $0x68] sm:$0xff]
    %v118 = vld [vmem:[#allocation5 + $0x70] sm:$0xff]
    %v119 = vld [vmem:[#allocation5 + $0x78] sm:$0xff]
    %v120 = vld [vmem:[#allocation5 + $0x80] sm:$0xff]
    %v121 = vld [vmem:[#allocation5 + $0x88] sm:$0xff]
    %v122 = vld [vmem:[#allocation5 + $0x90] sm:$0xff]
    %v123 = vld [vmem:[#allocation5 + $0x98] sm:$0xff]
    %v124 = vld [vmem:[#allocation5 + $0xa0] sm:$0xff]
    %v125 = vld [vmem:[#allocation5 + $0xa8] sm:$0xff]
    %v126 = vld [vmem:[#allocation5 + $0xb0] sm:$0xff]
    %v127 = vld [vmem:[#allocation5 + $0xb8] sm:$0xff]
    %v128 = vld [vmem:[#allocation5 + $0xc0] sm:$0xff]
    %v129 = vld [vmem:[#allocation5 + $0xc8] sm:$0xff]
    %v130 = vld [vmem:[#allocation5 + $0xd0] sm:$0xff]
    %v131 = vld [vmem:[#allocation5 + $0xd8] sm:$0xff]
    %v132 = vld [vmem:[#allocation5 + $0xe0] sm:$0xff]
    %v133 = vld [vmem:[#allocation5 + $0xe8] sm:$0xff]
    %v134 = vld [vmem:[#allocation5 + $0xf0] sm:$0xff]
    %v135 = vld [vmem:[#allocation5 + $0xf8] sm:$0xff]
    %v136 = vld [vmem:[#allocation7] sm:$0x3]
    %v138 = vperm.slane %v136, 0
    %v139 = vperm.slane %v136, 1
    %142 = vmatpush.msra.mxu0 %v134
    %143 = vmatpush.msra.mxu0 %v132
    %144 = vmatpush.msra.mxu0 %v130
    %145 = vmatpush.msra.mxu0 %v128
    %146 = vmatpush.msra.mxu0 %v126
    %147 = vmatpush.msra.mxu0 %v124
    %148 = vmatpush.msra.mxu0 %v122
    %149 = vmatpush.msra.mxu0 %v120
    %150 = vmatpush.msra.mxu0 %v118
    %151 = vmatpush.msra.mxu0 %v116
    %152 = vmatpush.msra.mxu0 %v114
    %153 = vmatpush.msra.mxu0 %v112
    %154 = vmatpush.msra.mxu0 %v110
    %155 = vmatpush.msra.mxu0 %v108
    %156 = vmatpush.msra.mxu0 %v106
    %157 = vmatpush.msra.mxu0 %v104
    %158 = vmatmul.f32.gmra.mxu0 %v103
    %v159 = vpop.f32.mrf.mxu0
    %v160 = vadd.f32 %v138, %v159
    %161 = vdwg.mxu0
    %162 = vmatpush.msra.mxu0 %v135
    %163 = vmatpush.msra.mxu0 %v133
    %164 = vmatpush.msra.mxu0 %v131
    %165 = vmatpush.msra.mxu0 %v129
    %166 = vmatpush.msra.mxu0 %v127
    %167 = vmatpush.msra.mxu0 %v125
    %168 = vmatpush.msra.mxu0 %v123
    %169 = vmatpush.msra.mxu0 %v121
    %170 = vmatpush.msra.mxu0 %v119
    %171 = vmatpush.msra.mxu0 %v117
    %172 = vmatpush.msra.mxu0 %v115
    %173 = vmatpush.msra.mxu0 %v113
    %174 = vmatpush.msra.mxu0 %v111
    %175 = vmatpush.msra.mxu0 %v109
    %176 = vmatpush.msra.mxu0 %v107
    %177 = vmatpush.msra.mxu0 %v105
    %178 = vmatmul.f32.gmra.mxu0 %v103
    %v179 = vpop.f32.mrf.mxu0
    %v180 = vadd.f32 %v139, %v179
    %181 = vdwg.mxu0
    %v182 = vmax.f32 %v160, 0.0
    %v183 = vmax.f32 %v180, 0.0
    %v184 = vld [vmem:[#allocation8] sm:$0xff]
    %v185 = vld [vmem:[#allocation8 + $0x8] sm:$0xff]
    %v186 = vld [vmem:[#allocation8 + $0x10] sm:$0xff]
    %v187 = vld [vmem:[#allocation8 + $0x18] sm:$0xff]
    %v188 = vld [vmem:[#allocation8 + $0x20] sm:$0xff]
    %v189 = vld [vmem:[#allocation8 + $0x28] sm:$0xff]
    %v190 = vld [vmem:[#allocation8 + $0x30] sm:$0xff]
    %v191 = vld [vmem:[#allocation8 + $0x38] sm:$0xff]
    %v192 = vld [vmem:[#allocation8 + $0x40] sm:$0xff]
    %v193 = vld [vmem:[#allocation8 + $0x48] sm:$0xff]
    %v194 = vld [vmem:[#allocation8 + $0x50] sm:$0xff]
    %v195 = vld [vmem:[#allocation8 + $0x58] sm:$0xff]
    %v196 = vld [vmem:[#allocation8 + $0x60] sm:$0xff]
    %v197 = vld [vmem:[#allocation8 + $0x68] sm:$0xff]
    %v198 = vld [vmem:[#allocation8 + $0x70] sm:$0xff]
    %v199 = vld [vmem:[#allocation8 + $0x78] sm:$0xff]
    %v200 = vld [vmem:[#allocation8 + $0x80] sm:$0xff]
    %v201 = vld [vmem:[#allocation8 + $0x88] sm:$0xff]
    %v202 = vld [vmem:[#allocation8 + $0x90] sm:$0xff]
    %v203 = vld [vmem:[#allocation8 + $0x98] sm:$0xff]
    %v204 = vld [vmem:[#allocation8 + $0xa0] sm:$0xff]
    %v205 = vld [vmem:[#allocation8 + $0xa8] sm:$0xff]
    %v206 = vld [vmem:[#allocation8 + $0xb0] sm:$0xff]
    %v207 = vld [vmem:[#allocation8 + $0xb8] sm:$0xff]
    %v208 = vld [vmem:[#allocation8 + $0xc0] sm:$0xff]
    %v209 = vld [vmem:[#allocation8 + $0xc8] sm:$0xff]
    %v210 = vld [vmem:[#allocation8 + $0xd0] sm:$0xff]
    %v211 = vld [vmem:[#allocation8 + $0xd8] sm:$0xff]
    %v212 = vld [vmem:[#allocation8 + $0xe0] sm:$0xff]
    %v213 = vld [vmem:[#allocation8 + $0xe8] sm:$0xff]
    %v214 = vld [vmem:[#allocation8 + $0xf0] sm:$0xff]
    %v215 = vld [vmem:[#allocation8 + $0xf8] sm:$0xff]
    %v216 = vld [vmem:[#allocation8 + $0x100] sm:$0xff]
    %v217 = vld [vmem:[#allocation8 + $0x108] sm:$0xff]
    %v218 = vld [vmem:[#allocation8 + $0x110] sm:$0xff]
    %v219 = vld [vmem:[#allocation8 + $0x118] sm:$0xff]
    %v220 = vld [vmem:[#allocation8 + $0x120] sm:$0xff]
    %v221 = vld [vmem:[#allocation8 + $0x128] sm:$0xff]
    %v222 = vld [vmem:[#allocation8 + $0x130] sm:$0xff]
    %v223 = vld [vmem:[#allocation8 + $0x138] sm:$0xff]
    %v224 = vld [vmem:[#allocation8 + $0x140] sm:$0xff]
    %v225 = vld [vmem:[#allocation8 + $0x148] sm:$0xff]
    %v226 = vld [vmem:[#allocation8 + $0x150] sm:$0xff]
    %v227 = vld [vmem:[#allocation8 + $0x158] sm:$0xff]
    %v228 = vld [vmem:[#allocation8 + $0x160] sm:$0xff]
    %v229 = vld [vmem:[#allocation8 + $0x168] sm:$0xff]
    %v230 = vld [vmem:[#allocation8 + $0x170] sm:$0xff]
    %v231 = vld [vmem:[#allocation8 + $0x178] sm:$0xff]
    %v232 = vld [vmem:[#allocation8 + $0x180] sm:$0xff]
    %v233 = vld [vmem:[#allocation8 + $0x188] sm:$0xff]
    %v234 = vld [vmem:[#allocation8 + $0x190] sm:$0xff]
    %v235 = vld [vmem:[#allocation8 + $0x198] sm:$0xff]
    %v236 = vld [vmem:[#allocation8 + $0x1a0] sm:$0xff]
    %v237 = vld [vmem:[#allocation8 + $0x1a8] sm:$0xff]
    %v238 = vld [vmem:[#allocation8 + $0x1b0] sm:$0xff]
    %v239 = vld [vmem:[#allocation8 + $0x1b8] sm:$0xff]
    %v240 = vld [vmem:[#allocation8 + $0x1c0] sm:$0xff]
    %v241 = vld [vmem:[#allocation8 + $0x1c8] sm:$0xff]
    %v242 = vld [vmem:[#allocation8 + $0x1d0] sm:$0xff]
    %v243 = vld [vmem:[#allocation8 + $0x1d8] sm:$0xff]
    %v244 = vld [vmem:[#allocation8 + $0x1e0] sm:$0xff]
    %v245 = vld [vmem:[#allocation8 + $0x1e8] sm:$0xff]
    %v246 = vld [vmem:[#allocation8 + $0x1f0] sm:$0xff]
    %v247 = vld [vmem:[#allocation8 + $0x1f8] sm:$0xff]
    %v248 = vld [vmem:[%s4] sm:$0x3]
    %v250 = vperm.slane %v248, 0
    %v251 = vperm.slane %v248, 1
    %254 = vmatpush.msra.mxu0 %v214
    %255 = vmatpush.msra.mxu0 %v212
    %256 = vmatpush.msra.mxu0 %v210
    %257 = vmatpush.msra.mxu0 %v208
    %258 = vmatpush.msra.mxu0 %v206
    %259 = vmatpush.msra.mxu0 %v204
    %260 = vmatpush.msra.mxu0 %v202
    %261 = vmatpush.msra.mxu0 %v200
    %262 = vmatpush.msra.mxu0 %v198
    %263 = vmatpush.msra.mxu0 %v196
    %264 = vmatpush.msra.mxu0 %v194
    %265 = vmatpush.msra.mxu0 %v192
    %266 = vmatpush.msra.mxu0 %v190
    %267 = vmatpush.msra.mxu0 %v188
    %268 = vmatpush.msra.mxu0 %v186
    %269 = vmatpush.msra.mxu0 %v184
    %270 = vmatmul.f32.gmra.mxu0 %v182
    %v271 = vpop.f32.mrf.mxu0
    %v272 = vadd.f32 %v250, %v271
    %273 = vdwg.mxu0
    %274 = vmatpush.msra.mxu0 %v246
    %275 = vmatpush.msra.mxu0 %v244
    %276 = vmatpush.msra.mxu0 %v242
    %277 = vmatpush.msra.mxu0 %v240
    %278 = vmatpush.msra.mxu0 %v238
    %279 = vmatpush.msra.mxu0 %v236
    %280 = vmatpush.msra.mxu0 %v234
    %281 = vmatpush.msra.mxu0 %v232
    %282 = vmatpush.msra.mxu0 %v230
    %283 = vmatpush.msra.mxu0 %v228
    %284 = vmatpush.msra.mxu0 %v226
    %285 = vmatpush.msra.mxu0 %v224
    %286 = vmatpush.msra.mxu0 %v222
    %287 = vmatpush.msra.mxu0 %v220
    %288 = vmatpush.msra.mxu0 %v218
    %289 = vmatpush.msra.mxu0 %v216
    %290 = vmatmul.f32.gmra.mxu0 %v183
    %v291 = vpop.f32.mrf.mxu0
    %v292 = vadd.f32 %v272, %v291
    %293 = vdwg.mxu0
    %294 = vmatpush.msra.mxu0 %v215
    %295 = vmatpush.msra.mxu0 %v213
    %296 = vmatpush.msra.mxu0 %v211
    %297 = vmatpush.msra.mxu0 %v209
    %298 = vmatpush.msra.mxu0 %v207
    %299 = vmatpush.msra.mxu0 %v205
    %300 = vmatpush.msra.mxu0 %v203
    %301 = vmatpush.msra.mxu0 %v201
    %302 = vmatpush.msra.mxu0 %v199
    %303 = vmatpush.msra.mxu0 %v197
    %304 = vmatpush.msra.mxu0 %v195
    %305 = vmatpush.msra.mxu0 %v193
    %306 = vmatpush.msra.mxu0 %v191
    %307 = vmatpush.msra.mxu0 %v189
    %308 = vmatpush.msra.mxu0 %v187
    %309 = vmatpush.msra.mxu0 %v185
    %310 = vmatmul.f32.gmra.mxu0 %v182
    %v311 = vpop.f32.mrf.mxu0
    %v312 = vadd.f32 %v251, %v311
    %313 = vdwg.mxu0
    %314 = vmatpush.msra.mxu0 %v247
    %315 = vmatpush.msra.mxu0 %v245
    %316 = vmatpush.msra.mxu0 %v243
    %317 = vmatpush.msra.mxu0 %v241
    %318 = vmatpush.msra.mxu0 %v239
    %319 = vmatpush.msra.mxu0 %v237
    %320 = vmatpush.msra.mxu0 %v235
    %321 = vmatpush.msra.mxu0 %v233
    %322 = vmatpush.msra.mxu0 %v231
    %323 = vmatpush.msra.mxu0 %v229
    %324 = vmatpush.msra.mxu0 %v227
    %325 = vmatpush.msra.mxu0 %v225
    %326 = vmatpush.msra.mxu0 %v223
    %327 = vmatpush.msra.mxu0 %v221
    %328 = vmatpush.msra.mxu0 %v219
    %329 = vmatpush.msra.mxu0 %v217
    %330 = vmatmul.f32.gmra.mxu0 %v183
    %v331 = vpop.f32.mrf.mxu0
    %v332 = vadd.f32 %v312, %v331
    %333 = vdwg.mxu0
    %v334 = vmax.f32 %v292, 0.0
    %v335 = vmax.f32 %v332, 0.0
    %v336 = vld [vmem:[#allocation10] sm:$0xff]
    %v337 = vld [vmem:[#allocation10 + $0x8] sm:$0xff]
    %v338 = vld [vmem:[#allocation10 + $0x10] sm:$0xff]
    %v339 = vld [vmem:[#allocation10 + $0x18] sm:$0xff]
    %v340 = vld [vmem:[#allocation10 + $0x20] sm:$0xff]
    %v341 = vld [vmem:[#allocation10 + $0x28] sm:$0xff]
    %v342 = vld [vmem:[#allocation10 + $0x30] sm:$0xff]
    %v343 = vld [vmem:[#allocation10 + $0x38] sm:$0xff]
    %v344 = vld [vmem:[#allocation10 + $0x40] sm:$0xff]
    %v345 = vld [vmem:[#allocation10 + $0x48] sm:$0xff]
    %v346 = vld [vmem:[#allocation10 + $0x50] sm:$0xff]
    %v347 = vld [vmem:[#allocation10 + $0x58] sm:$0xff]
    %v348 = vld [vmem:[#allocation10 + $0x60] sm:$0xff]
    %v349 = vld [vmem:[#allocation10 + $0x68] sm:$0xff]
    %v350 = vld [vmem:[#allocation10 + $0x70] sm:$0xff]
    %v351 = vld [vmem:[#allocation10 + $0x78] sm:$0xff]
    %v352 = vld [vmem:[#allocation10 + $0x80] sm:$0xff]
    %v353 = vld [vmem:[#allocation10 + $0x88] sm:$0xff]
    %v354 = vld [vmem:[#allocation10 + $0x90] sm:$0xff]
    %v355 = vld [vmem:[#allocation10 + $0x98] sm:$0xff]
    %v356 = vld [vmem:[#allocation10 + $0xa0] sm:$0xff]
    %v357 = vld [vmem:[#allocation10 + $0xa8] sm:$0xff]
    %v358 = vld [vmem:[#allocation10 + $0xb0] sm:$0xff]
    %v359 = vld [vmem:[#allocation10 + $0xb8] sm:$0xff]
    %v360 = vld [vmem:[#allocation10 + $0xc0] sm:$0xff]
    %v361 = vld [vmem:[#allocation10 + $0xc8] sm:$0xff]
    %v362 = vld [vmem:[#allocation10 + $0xd0] sm:$0xff]
    %v363 = vld [vmem:[#allocation10 + $0xd8] sm:$0xff]
    %v364 = vld [vmem:[#allocation10 + $0xe0] sm:$0xff]
    %v365 = vld [vmem:[#allocation10 + $0xe8] sm:$0xff]
    %v366 = vld [vmem:[#allocation10 + $0xf0] sm:$0xff]
    %v367 = vld [vmem:[#allocation10 + $0xf8] sm:$0xff]
    %v368 = vld [vmem:[%s6] sm:$0x1]
    %v370 = vperm.slane %v368, 0
    %372 = vmatpush.msra.mxu0 %v351
    %373 = vmatpush.msra.mxu0 %v350
    %374 = vmatpush.msra.mxu0 %v349
    %375 = vmatpush.msra.mxu0 %v348
    %376 = vmatpush.msra.mxu0 %v347
    %377 = vmatpush.msra.mxu0 %v346
    %378 = vmatpush.msra.mxu0 %v345
    %379 = vmatpush.msra.mxu0 %v344
    %380 = vmatpush.msra.mxu0 %v343
    %381 = vmatpush.msra.mxu0 %v342
    %382 = vmatpush.msra.mxu0 %v341
    %383 = vmatpush.msra.mxu0 %v340
    %384 = vmatpush.msra.mxu0 %v339
    %385 = vmatpush.msra.mxu0 %v338
    %386 = vmatpush.msra.mxu0 %v337
    %387 = vmatpush.msra.mxu0 %v336
    %388 = vmatmul.f32.gmra.mxu0 %v334
    %v389 = vpop.f32.mrf.mxu0
    %v390 = vadd.f32 %v370, %v389
    %391 = vdwg.mxu0
    %392 = vmatpush.msra.mxu0 %v367
    %393 = vmatpush.msra.mxu0 %v366
    %394 = vmatpush.msra.mxu0 %v365
    %395 = vmatpush.msra.mxu0 %v364
    %396 = vmatpush.msra.mxu0 %v363
    %397 = vmatpush.msra.mxu0 %v362
    %398 = vmatpush.msra.mxu0 %v361
    %399 = vmatpush.msra.mxu0 %v360
    %400 = vmatpush.msra.mxu0 %v359
    %401 = vmatpush.msra.mxu0 %v358
    %402 = vmatpush.msra.mxu0 %v357
    %403 = vmatpush.msra.mxu0 %v356
    %404 = vmatpush.msra.mxu0 %v355
    %405 = vmatpush.msra.mxu0 %v354
    %406 = vmatpush.msra.mxu0 %v353
    %407 = vmatpush.msra.mxu0 %v352
    %408 = vmatmul.f32.gmra.mxu0 %v335
    %v409 = vpop.f32.mrf.mxu0
    %v410 = vadd.f32 %v390, %v409
    %411 = vdwg.mxu0
    %412 = vst [vmem:[#allocation11] sm:$0xff] %v410
    // Predicated region
    $region50: #{tpu_custom_call.1} parent=1 // pred_check
      _
    $region51: #{tpu_custom_call.1} parent=1 // pred_check_branch
      %414 = sbr.rel (0) target = $region53
    $region52: #{tpu_custom_call.1} parent=1 // pred_region
      %416 = vsyncadd [#allocation4], 96
      %s417 = sshll.u32 [#allocation11], 4
      %s418 = int_to_ptr.vmem [resolvable:$true] %s417
      %s419 = sshll.u32 %s7, 4
      %s420 = int_to_ptr.hbm [resolvable:$true] %s419
      %425 = dma.vmem_to_hbm [thread:$0]  %s418, 32, %s420, [#allocation4], 32, 32, 2
    $region53: #{tpu_custom_call.1} parent=1 // pred_fallthru
      _
    // Predicated region
    $region54: #{tpu_custom_call.1} parent=1 // pred_check
      _
    $region55: #{tpu_custom_call.1} parent=1 // pred_check_branch
      %427 = sbr.rel (0) target = $region57
    $region56: #{tpu_custom_call.1} parent=1 // pred_region
      %429 = dma.done [#allocation4], 128
    $region57: #{tpu_custom_call.1} parent=1 // pred_fallthru
      _
    %430 = vsyncpa [#allocation3], 1
    %431 = vsyncpa [#allocation6], 1
    %432 = vsyncpa [#allocation9], 1
    %433 = vsyncpa [#allocation4], 1

</llo_original>
